<compile_context>
chip_gen: v7x
topology: tpu7x:2x2x1
jax: 0.10.0
libtpu: 0.0.40
codegen_flags: <defaults>
</compile_context>

<pallas_src>
import functools

import jax
import jax.numpy as jnp
from jax.experimental import pallas as pl
from jax.experimental.pallas import tpu as pltpu


def _soft_dice_kernel(pred_ref, gt_ref, inter_ref, union_ref, *,
                      nsteps, chunk, sub, d_rows, first_masked,
                      apply_sigmoid, has_mask):
    """Accumulate per-row partial intersection / union sums.

    pred_ref, gt_ref   : (rows, chunk) input blocks of lane window `l`.
    inter_ref, union_ref : (1, rows, 128) f32 output blocks, revisited across
        the reduction axis (grid axis 1) -> they act as the accumulators.
    """
    p_half = pl.program_id(0)            # "parallel" lane-half axis
    k = pl.program_id(1)                 # "arbitrary" reduction axis
    l = p_half * nsteps + k              # logical lane-block index

    @pl.when(k == 0)
    def _init():
        inter_ref[...] = jnp.zeros_like(inter_ref)
        union_ref[...] = jnp.zeros_like(union_ref)

    ntiles = chunk // sub
    folds = sub // 128

    def accumulate(masked):
        acc_i = inter_ref[0]             # (rows, 128) f32
        acc_u = union_ref[0]
        for t in range(ntiles):          # static sub-tile stream (~8 vregs/op)
            sl = slice(t * sub, (t + 1) * sub)
            p = pred_ref[:, sl].astype(jnp.float32)
            if apply_sigmoid:
                p = jax.nn.sigmoid(p)    # EUP
            g = gt_ref[:, sl].astype(jnp.float32)
            if masked:
                # Lanes past d_rows hold undefined data; mask AFTER sigmoid.
                lane = jax.lax.broadcasted_iota(jnp.int32, p.shape, 1)
                valid = (l * chunk + t * sub + lane) < d_rows
                p = jnp.where(valid, p, 0.0)
                g = jnp.where(valid, g, 0.0)
            prod = p * g                 # intersection terms
            both = p + g                 # sum(p) + sum(g) == sum(p + g)
            for j in range(folds):       # fold (rows, sub) -> (rows, 128)
                jsl = slice(j * 128, (j + 1) * 128)
                acc_i = acc_i + prod[:, jsl]
                acc_u = acc_u + both[:, jsl]
        inter_ref[0] = acc_i
        union_ref[0] = acc_u

    if not has_mask:
        accumulate(False)                # no block ever touches the tail
    elif first_masked == 0:
        accumulate(True)                 # single (partial) block
    else:
        # Only blocks at / past the ragged boundary pay the mask ops.
        @pl.when(l < first_masked)
        def _bulk():
            accumulate(False)

        @pl.when(l >= first_masked)
        def _tail():
            accumulate(True)


def soft_dice_loss(y_pr, y_gt, *, smooth=1e-05, activation="sigmoid",
                   target_block_bytes=2 * 1024 * 1024):
    """1 - diceCoeff(y_pr, y_gt): matches the PyTorch SoftDiceLoss forward."""
    if activation == "sigmoid":
        apply_sigmoid = True
    elif activation is None or activation == "none":
        apply_sigmoid = False
    else:
        # TODO(synk): softmax2d (nn.Softmax2d) activation not implemented.
        raise NotImplementedError("Activation implemented for sigmoid/none")

    assert y_pr.shape == y_gt.shape, (y_pr.shape, y_gt.shape)
    n = int(y_pr.shape[0])
    d = 1
    for s in y_pr.shape[1:]:
        d *= int(s)

    # ---- sub-row folding: (N, D) -> (N*r, D//r).  Fills vreg sublanes and
    # makes blocks squarer so the lane chunk below can reach ~1 MiB.
    r = 1
    for cand in (32, 16, 8, 4, 2):
        if d % cand == 0 and n * cand <= 32 and d // cand >= 128:
            r = cand
            break
    rows = n * r
    d_rows = d // r
    # TODO(synk): very large batches (rows > 64) would want an extra row-block
    # grid axis; typical segmentation batches keep rows <= 32 here.

    pred = y_pr.reshape(rows, d_rows)    # free reshape: no pad, no dtype cast
    gt = y_gt.reshape(rows, d_rows)
    itm_p = pred.dtype.itemsize
    itm_g = gt.dtype.itemsize

    # ---- generation-aware VMEM budget (v7x: 64 MiB phys, v5e/v6e: 128 MiB).
    try:
        vmem_cap = int(pltpu.get_tpu_info().vmem_capacity_bytes)
    except Exception:
        vmem_cap = 64 * 1024 * 1024      # conservative fallback
    vmem_ceiling = min(vmem_cap * 5 // 8, 96 * 1024 * 1024)
    block_budget = vmem_ceiling - 6 * 1024 * 1024

    # ---- sub-tile width: ~8K elements per (rows, sub) tile (8 f32 vregs per
    # operand) so the in-kernel streaming keeps vreg pressure flat.
    lanes_pad = pl.cdiv(d_rows, 128) * 128
    sub = min(512, max(128, ((8192 // max(rows, 1)) // 128) * 128))
    sub = min(sub, lanes_pad)

    # ---- lane chunk: auto-sized toward target_block_bytes per input block,
    # capped at 32 static sub-tiles and by the double-buffered-input VMEM cap.
    max_tiles = 32
    chunk_data_cap = pl.cdiv(lanes_pad, sub) * sub
    chunk_target = max(sub, (target_block_bytes // max(rows * itm_p, 1)) // sub * sub)
    chunk_vmem_cap = max(
        sub, (block_budget // max(2 * rows * (itm_p + itm_g), 1)) // sub * sub)
    chunk = max(sub, min(chunk_target, max_tiles * sub, chunk_data_cap,
                         chunk_vmem_cap))

    total_blocks = pl.cdiv(d_rows, chunk)

    # ---- leading "parallel" axis: split the lane range into 2 halves with
    # per-half partial outputs (both TensorCores on v7x, plain loop elsewhere).
    n_par = 2 if total_blocks >= 2 else 1
    nsteps = pl.cdiv(total_blocks, n_par)
    needs_clamp = n_par * nsteps > total_blocks     # duplicated (fully masked) block
    has_mask = n_par * nsteps * chunk > d_rows
    first_masked = d_rows // chunk

    if needs_clamp:
        last_block = total_blocks - 1

        def in_map(p, k):
            return (0, jnp.minimum(p * nsteps + k, last_block))
    else:
        def in_map(p, k):
            return (0, p * nsteps + k)

    def out_map(p, k):
        return (p, 0, 0)

    vmem_need = (2 * chunk * rows * (itm_p + itm_g)     # double-buffered inputs
                 + 4 * rows * 128 * 4                   # partial-sum outputs
                 + 4 * 1024 * 1024)                     # compiler headroom
    vmem_limit = int(min(vmem_ceiling, max(32 * 1024 * 1024, vmem_need)))

    kernel = functools.partial(
        _soft_dice_kernel,
        nsteps=nsteps, chunk=chunk, sub=sub, d_rows=d_rows,
        first_masked=first_masked, apply_sigmoid=apply_sigmoid,
        has_mask=has_mask)

    # TODO(synk): in the tiny-D / forced-small-chunk regime, pipeline_mode=
    # pl.Buffered(3) on the input specs would hide DMA latency a bit more.
    inter_parts, union_parts = pl.pallas_call(
        kernel,
        out_shape=(jax.ShapeDtypeStruct((n_par, rows, 128), jnp.float32),
                   jax.ShapeDtypeStruct((n_par, rows, 128), jnp.float32)),
        grid_spec=pltpu.PrefetchScalarGridSpec(
            num_scalar_prefetch=0,
            grid=(n_par, nsteps),
            in_specs=[pl.BlockSpec((rows, chunk), in_map),
                      pl.BlockSpec((rows, chunk), in_map)],
            out_specs=[pl.BlockSpec((1, rows, 128), out_map),
                       pl.BlockSpec((1, rows, 128), out_map)],
        ),
        compiler_params=pltpu.CompilerParams(
            dimension_semantics=("parallel", "arbitrary"),
            vmem_limit_bytes=vmem_limit),
    )(pred, gt)

    # ---- tiny O(N) epilogue in plain JAX (per review): combine lane-halves,
    # regroup the r folded sub-rows per sample, apply the dice formula.
    inter = inter_parts.sum(axis=(0, 2)).reshape(n, r).sum(axis=1)
    union = union_parts.sum(axis=(0, 2)).reshape(n, r).sum(axis=1)
    dice = (2.0 * inter + float(smooth)) / (union + float(smooth))
    return 1.0 - jnp.sum(dice) / n


def _reference(y_pr, y_gt, smooth=1e-05, activation="sigmoid"):
    pred = y_pr.astype(jnp.float32)
    if activation == "sigmoid":
        pred = jax.nn.sigmoid(pred)
    n = y_gt.shape[0]
    pred_flat = pred.reshape(n, -1)
    gt_flat = y_gt.reshape(n, -1).astype(jnp.float32)
    inter = (pred_flat * gt_flat).sum(1)
    union = pred_flat.sum(1) + gt_flat.sum(1)
    dice = (2.0 * inter + smooth) / (union + smooth)
    return 1.0 - dice.sum() / n


if __name__ == "__main__":
    key = jax.random.PRNGKey(0)
    k1, k2, k3, k4, k5, k6 = jax.random.split(key, 6)

    # Case 1: canonical NCHW logits + binary mask, sigmoid activation.
    y_pr = jax.random.normal(k1, (2, 4, 16, 16), dtype=jnp.float32)
    y_gt = (jax.random.uniform(k2, (2, 4, 16, 16)) > 0.5).astype(jnp.float32)
    loss = jax.block_until_ready(soft_dice_loss(y_pr, y_gt))
    ref = _reference(y_pr, y_gt)
    assert jnp.allclose(loss, ref, atol=1e-5, rtol=1e-4), (loss, ref)

    # Case 2: ragged lane tail (d_rows not a multiple of 128), bf16 mask.
    y_pr2 = jax.random.normal(k3, (2, 3, 20, 20), dtype=jnp.float32)
    y_gt2 = (jax.random.uniform(k4, (2, 3, 20, 20)) > 0.5).astype(jnp.bfloat16)
    loss2 = jax.block_until_ready(soft_dice_loss(y_pr2, y_gt2))
    ref2 = _reference(y_pr2, y_gt2)
    assert jnp.allclose(loss2, ref2, atol=1e-5, rtol=1e-4), (loss2, ref2)

    # Case 3: activation=None path (inputs already probabilities), batch=3.
    y_pr3 = jax.random.uniform(k1, (3, 2, 8, 8), dtype=jnp.float32)
    y_gt3 = (jax.random.uniform(k2, (3, 2, 8, 8)) > 0.5).astype(jnp.float32)
    loss3 = jax.block_until_ready(soft_dice_loss(y_pr3, y_gt3, activation=None))
    ref3 = _reference(y_pr3, y_gt3, activation=None)
    assert jnp.allclose(loss3, ref3, atol=1e-5, rtol=1e-4), (loss3, ref3)

    # Case 4: larger spatial extent -> multi-block reduction, 2-way parallel
    # lane split, clamped duplicate block and masked tail all exercised.
    y_pr4 = jax.random.normal(k5, (2, 4, 384, 384), dtype=jnp.float32)
    y_gt4 = (jax.random.uniform(k6, (2, 4, 384, 384)) > 0.5).astype(jnp.float32)
    loss4 = jax.block_until_ready(soft_dice_loss(y_pr4, y_gt4))
    ref4 = _reference(y_pr4, y_gt4)
    assert jnp.allclose(loss4, ref4, atol=1e-5, rtol=1e-4), (loss4, ref4)

    print("KERNEL_OK")
</pallas_src>

<mosaic_0001>
module attributes {stable_mosaic.version = 11 : i64} {
  func.func @_soft_dice_kernel(%arg0: i32, %arg1: i32, %arg2: memref<16x128xf32, #tpu.memory_space<vmem>>, %arg3: memref<16x128xf32, #tpu.memory_space<vmem>>, %arg4: memref<1x16x128xf32, #tpu.memory_space<vmem>>, %arg5: memref<1x16x128xf32, #tpu.memory_space<vmem>>) attributes {dimension_semantics = [#tpu.dimension_semantics<parallel>, #tpu.dimension_semantics<arbitrary>], iteration_bounds = array<i64: 1, 1>, scalar_prefetch = 0 : i64, scratch_operands = 0 : i64, tpu.core_type = #tpu.core_type<tc>, window_params = [{transform_indices = @transform_0, window_bounds = array<i64: 16, 128>}, {transform_indices = @transform_1, window_bounds = array<i64: 16, 128>}, {transform_indices = @transform_2, window_bounds = array<i64: 1, 16, 128>}, {transform_indices = @transform_3, window_bounds = array<i64: 1, 16, 128>}]} {
    %c0_i32 = arith.constant 0 : i32
    %0 = arith.cmpi eq, %arg1, %c0_i32 : i32
    %1 = arith.extui %0 : i1 to i32
    %c0_i32_0 = arith.constant 0 : i32
    %2 = arith.cmpi ne, %1, %c0_i32_0 : i32
    scf.if %2 {
      %cst_16 = arith.constant 0.000000e+00 : f32
      %24 = vector.broadcast %cst_16 : f32 to vector<1x16x128xf32>
      %c0_17 = arith.constant 0 : index
      %c0_18 = arith.constant 0 : index
      %c0_19 = arith.constant 0 : index
      %25 = vector.load %arg4[%c0_17, %c0_18, %c0_19] : memref<1x16x128xf32, #tpu.memory_space<vmem>>, vector<1x16x128xf32>
      tpu.vector_store %arg4[%c0_17, %c0_18, %c0_19], %24 {strides = array<i32>} : memref<1x16x128xf32, #tpu.memory_space<vmem>>, vector<1x16x128xf32>,
      %cst_20 = arith.constant 0.000000e+00 : f32
      %26 = vector.broadcast %cst_20 : f32 to vector<1x16x128xf32>
      %c0_21 = arith.constant 0 : index
      %c0_22 = arith.constant 0 : index
      %c0_23 = arith.constant 0 : index
      %27 = vector.load %arg5[%c0_21, %c0_22, %c0_23] : memref<1x16x128xf32, #tpu.memory_space<vmem>>, vector<1x16x128xf32>
      tpu.vector_store %arg5[%c0_21, %c0_22, %c0_23], %26 {strides = array<i32>} : memref<1x16x128xf32, #tpu.memory_space<vmem>>, vector<1x16x128xf32>,
    } else {
    }
    %c0 = arith.constant 0 : index
    %c0_1 = arith.constant 0 : index
    %c0_2 = arith.constant 0 : index
    %3 = vector.load %arg4[%c0, %c0_1, %c0_2] : memref<1x16x128xf32, #tpu.memory_space<vmem>>, vector<1x16x128xf32>
    %4 = vector.shape_cast %3 : vector<1x16x128xf32> to vector<16x128xf32>
    %c0_3 = arith.constant 0 : index
    %c0_4 = arith.constant 0 : index
    %c0_5 = arith.constant 0 : index
    %5 = vector.load %arg5[%c0_3, %c0_4, %c0_5] : memref<1x16x128xf32, #tpu.memory_space<vmem>>, vector<1x16x128xf32>
    %6 = vector.shape_cast %5 : vector<1x16x128xf32> to vector<16x128xf32>
    %c0_6 = arith.constant 0 : index
    %c0_7 = arith.constant 0 : index
    %7 = vector.load %arg2[%c0_6, %c0_7] : memref<16x128xf32, #tpu.memory_space<vmem>>, vector<16x128xf32>
    %8 = arith.negf %7 : vector<16x128xf32>
    %9 = math.exp %8 : vector<16x128xf32>
    %cst = arith.constant 1.000000e+00 : f32
    %10 = vector.broadcast %cst : f32 to vector<16x128xf32>
    %11 = arith.addf %10, %9 : vector<16x128xf32>
    %12 = arith.divf %10, %11 : vector<16x128xf32>
    %c0_8 = arith.constant 0 : index
    %c0_9 = arith.constant 0 : index
    %13 = vector.load %arg3[%c0_8, %c0_9] : memref<16x128xf32, #tpu.memory_space<vmem>>, vector<16x128xf32>
    %14 = arith.mulf %12, %13 : vector<16x128xf32>
    %15 = arith.addf %12, %13 : vector<16x128xf32>
    %16 = arith.addf %4, %14 : vector<16x128xf32>
    %17 = arith.addf %6, %15 : vector<16x128xf32>
    %c0_10 = arith.constant 0 : index
    %c0_11 = arith.constant 0 : index
    %c0_12 = arith.constant 0 : index
    %18 = vector.load %arg4[%c0_10, %c0_11, %c0_12] : memref<1x16x128xf32, #tpu.memory_space<vmem>>, vector<1x16x128xf32>
    %19 = vector.shape_cast %18 : vector<1x16x128xf32> to vector<16x128xf32>
    %20 = vector.shape_cast %16 : vector<16x128xf32> to vector<1x16x128xf32>
    tpu.vector_store %arg4[%c0_10, %c0_11, %c0_12], %20 {strides = array<i32>} : memref<1x16x128xf32, #tpu.memory_space<vmem>>, vector<1x16x128xf32>,
    %c0_13 = arith.constant 0 : index
    %c0_14 = arith.constant 0 : index
    %c0_15 = arith.constant 0 : index
    %21 = vector.load %arg5[%c0_13, %c0_14, %c0_15] : memref<1x16x128xf32, #tpu.memory_space<vmem>>, vector<1x16x128xf32>
    %22 = vector.shape_cast %21 : vector<1x16x128xf32> to vector<16x128xf32>
    %23 = vector.shape_cast %17 : vector<16x128xf32> to vector<1x16x128xf32>
    tpu.vector_store %arg5[%c0_13, %c0_14, %c0_15], %23 {strides = array<i32>} : memref<1x16x128xf32, #tpu.memory_space<vmem>>, vector<1x16x128xf32>,
    return
  }
  func.func @transform_0(%arg0: i32, %arg1: i32) -> (i32, i32) {
    %c1_i32 = arith.constant 1 : i32
    %0 = arith.muli %arg0, %c1_i32 : i32
    %1 = arith.addi %0, %arg1 : i32
    %c0_i32 = arith.constant 0 : i32
    %c0_i32_0 = arith.constant 0 : i32
    return %c0_i32, %1 : i32, i32
  }
  func.func @transform_1(%arg0: i32, %arg1: i32) -> (i32, i32) {
    %c1_i32 = arith.constant 1 : i32
    %0 = arith.muli %arg0, %c1_i32 : i32
    %1 = arith.addi %0, %arg1 : i32
    %c0_i32 = arith.constant 0 : i32
    %c0_i32_0 = arith.constant 0 : i32
    return %c0_i32, %1 : i32, i32
  }
  func.func @transform_2(%arg0: i32, %arg1: i32) -> (i32, i32, i32) {
    %c0_i32 = arith.constant 0 : i32
    %c0_i32_0 = arith.constant 0 : i32
    %c0_i32_1 = arith.constant 0 : i32
    return %arg0, %c0_i32, %c0_i32_0 : i32, i32, i32
  }
  func.func @transform_3(%arg0: i32, %arg1: i32) -> (i32, i32, i32) {
    %c0_i32 = arith.constant 0 : i32
    %c0_i32_0 = arith.constant 0 : i32
    %c0_i32_1 = arith.constant 0 : i32
    return %arg0, %c0_i32, %c0_i32_0 : i32, i32, i32
  }
}

</mosaic_0001>

<llo_original>
// kernel: tpu_custom_call.1
$region0: #{tpu_custom_call.1}
  #allocation0 [shape = 'u32[]', space=smem, size = 0x4, offset = 0x4, fixed_abs, tag = 'smem constant byte address 0x4 - core index']
  #allocation1 [shape = 'u32[144,128]{1,0:T(1,128)}', space=vmem, size = 0x12000, scoped, tag = 'internal scratch']
  %s0 = inlined_call_operand.hbm [shape: f32[16,128], index: 0, kind: input, shape index: {}]
  %s1 = inlined_call_operand.hbm [shape: f32[16,128], index: 1, kind: input, shape index: {}]
  %s2 = inlined_call_operand.hbm [shape: f32[1,16,128], index: 2, kind: output, shape index: {0}]
  %s3 = inlined_call_operand.hbm [shape: f32[1,16,128], index: 3, kind: output, shape index: {1}]
  %4 = xla_tuple %s2, %s3
  %s5 = sld [smem:[#allocation0]]
  $region38: #{tpu_custom_call.1} parent=0
    _
  %s7 = ssub.s32 1, %s5
  %s8 = scalar_select 0, %s7, %s5
  $region1: #{tpu_custom_call.1} parent=0
    #allocation2 [shape = 'u8[8192]{0}', space=vmem, size = 0x2000, scoped, tag = 'input window, operand 0, single buffered']
    #allocation3 [shape = 's32[1]{0}', space=sflag, size = 0x4, scoped, tag = 'scoped memory for tpu_custom_call.1']
    #allocation4 [shape = 's32[1]{0}', space=sflag, size = 0x4, scoped, tag = 'scoped memory for tpu_custom_call.1']
    #allocation5 [shape = 'u8[8192]{0}', space=vmem, size = 0x2000, scoped, tag = 'input window, operand 1, single buffered']
    #allocation6 [shape = 's32[1]{0}', space=sflag, size = 0x4, scoped, tag = 'scoped memory for tpu_custom_call.1']
    #allocation7 [shape = 'u8[8192]{0}', space=vmem, size = 0x2000, scoped, tag = 'output window, operand 0, single buffered']
    #allocation8 [shape = 'u8[8192]{0}', space=vmem, size = 0x2000, scoped, tag = 'output window, operand 1, single buffered']
    #allocation9 [shape = 's32[1]{0}', space=sflag, size = 0x4, scoped, tag = 'scoped memory for tpu_custom_call.1']
    %9 = vsyncpa [#allocation3], 0
    %10 = vsyncpa [#allocation6], 0
    %11 = vsyncpa [#allocation4], 0
    %12 = vsyncpa [#allocation9], 0
    // Predicated region
    $region2: #{tpu_custom_call.1} parent=1 // pred_check
      _
    $region3: #{tpu_custom_call.1} parent=1 // pred_check_branch
      %14 = sbr.rel (0) target = $region5
    $region4: #{tpu_custom_call.1} parent=1 // pred_region
      %s15 = sadd.s32 0, 0
      %s17 = ssub.s32 256, 256
      %18 = vsyncadd [#allocation3], %s17
      %s19 = smul.addr %s15, 128
      %s20 = scalar_lea.hbm %s0, %s19
      %s21 = sshll.u32 [#allocation2], 4
      %s22 = int_to_ptr.vmem [resolvable:$true] %s21
      %27 = dma.hbm_to_vmem [thread:$0]  %s20, 256, %s22, [#allocation3], 128, 128, 8
    $region5: #{tpu_custom_call.1} parent=1 // pred_fallthru
      _
    // Predicated region
    $region6: #{tpu_custom_call.1} parent=1 // pred_check
      _
    $region7: #{tpu_custom_call.1} parent=1 // pred_check_branch
      %29 = sbr.rel (0) target = $region9
    $region8: #{tpu_custom_call.1} parent=1 // pred_region
      %s30 = sadd.s32 0, 0
      %s32 = ssub.s32 256, 256
      %33 = vsyncadd [#allocation6], %s32
      %s34 = smul.addr %s30, 128
      %s35 = scalar_lea.hbm %s1, %s34
      %s36 = sshll.u32 [#allocation5], 4
      %s37 = int_to_ptr.vmem [resolvable:$true] %s36
      %42 = dma.hbm_to_vmem [thread:$0]  %s35, 256, %s37, [#allocation6], 128, 128, 8
    $region9: #{tpu_custom_call.1} parent=1 // pred_fallthru
      _
    // Predicated region
    $region10: #{tpu_custom_call.1} parent=1 // pred_check
      _
    $region11: #{tpu_custom_call.1} parent=1 // pred_check_branch
      %44 = sbr.rel (0) target = $region13
    $region12: #{tpu_custom_call.1} parent=1 // pred_region
      %45 = dma.done [#allocation3], 256
    $region13: #{tpu_custom_call.1} parent=1 // pred_fallthru
      _
    // Predicated region
    $region14: #{tpu_custom_call.1} parent=1 // pred_check
      _
    $region15: #{tpu_custom_call.1} parent=1 // pred_check_branch
      %47 = sbr.rel (0) target = $region17
    $region16: #{tpu_custom_call.1} parent=1 // pred_region
      %48 = dma.done [#allocation6], 256
    $region17: #{tpu_custom_call.1} parent=1 // pred_fallthru
      _
    %s49 = sadd.s32 0, 0
    %s50 = sadd.s32 0, 0
    %p51 = scmp.eq.s32.totalorder 0, 0
    // Predicated region
    $region18: #{tpu_custom_call.1} parent=1 // pred_check
      %p52 = pneg %p51
    $region19: #{tpu_custom_call.1} parent=1 // pred_check_branch
      %54 = sbr.rel (%p52) target = $region21
    $region20: #{tpu_custom_call.1} parent=1 // pred_region
      %55 = vst [vmem:[#allocation7] sm:$0xff] 0.0
      %56 = vst [vmem:[#allocation7 + $0x8] sm:$0xff] 0.0
      %57 = vst [vmem:[#allocation8] sm:$0xff] 0.0
      %58 = vst [vmem:[#allocation8 + $0x8] sm:$0xff] 0.0
    $region21: #{tpu_custom_call.1} parent=1 // pred_fallthru
      _
    %v59 = vld [vmem:[#allocation7] sm:$0xff]
    %v60 = vld [vmem:[#allocation7 + $0x8] sm:$0xff]
    %v61 = vld [vmem:[#allocation8] sm:$0xff]
    %v62 = vld [vmem:[#allocation8 + $0x8] sm:$0xff]
    %v63 = vld [vmem:[#allocation2] sm:$0xff]
    %v64 = vld [vmem:[#allocation2 + $0x8] sm:$0xff]
    %v65 = vxor.u32 %v63, 2147483648
    %v66 = vxor.u32 %v64, 2147483648
    %v67 = vmul.f32 %v65, 1.442695
    %v68 = vpow.pop %v67
    %v69 = vmul.f32 %v66, 1.442695
    %v70 = vpow.pop %v69
    %v71 = vadd.f32 %v68, 1.0
    %v72 = vadd.f32 %v70, 1.0
    %v73 = vrcp.pop %v71
    %v74 = vmul.f32 1.0, %v73
    %v75 = vrcp.pop %v72
    %v76 = vmul.f32 1.0, %v75
    %v77 = vld [vmem:[#allocation5] sm:$0xff]
    %v78 = vld [vmem:[#allocation5 + $0x8] sm:$0xff]
    %v79 = vmul.f32 %v74, %v77
    %v80 = vmul.f32 %v76, %v78
    %v81 = vadd.f32 %v74, %v77
    %v82 = vadd.f32 %v76, %v78
    %v83 = vadd.f32 %v59, %v79
    %v84 = vadd.f32 %v60, %v80
    %v85 = vadd.f32 %v61, %v81
    %v86 = vadd.f32 %v62, %v82
    %87 = vst [vmem:[#allocation7] sm:$0xff] %v83
    %88 = vst [vmem:[#allocation7 + $0x8] sm:$0xff] %v84
    %89 = vst [vmem:[#allocation8] sm:$0xff] %v85
    %90 = vst [vmem:[#allocation8 + $0x8] sm:$0xff] %v86
    // Predicated region
    $region22: #{tpu_custom_call.1} parent=1 // pred_check
      _
    $region23: #{tpu_custom_call.1} parent=1 // pred_check_branch
      %92 = sbr.rel (0) target = $region25
    $region24: #{tpu_custom_call.1} parent=1 // pred_region
      %s94 = ssub.s32 256, 256
      %95 = vsyncadd [#allocation4], %s94
      %s96 = sshll.u32 [#allocation7], 4
      %s97 = int_to_ptr.vmem [resolvable:$true] %s96
      %102 = dma.vmem_to_hbm [thread:$0]  %s97, 256, %s2, [#allocation4], 128, 128, 8
    $region25: #{tpu_custom_call.1} parent=1 // pred_fallthru
      _
    // Predicated region
    $region26: #{tpu_custom_call.1} parent=1 // pred_check
      _
    $region27: #{tpu_custom_call.1} parent=1 // pred_check_branch
      %104 = sbr.rel (0) target = $region29
    $region28: #{tpu_custom_call.1} parent=1 // pred_region
      %s106 = ssub.s32 256, 256
      %107 = vsyncadd [#allocation9], %s106
      %s108 = sshll.u32 [#allocation8], 4
      %s109 = int_to_ptr.vmem [resolvable:$true] %s108
      %114 = dma.vmem_to_hbm [thread:$0]  %s109, 256, %s3, [#allocation9], 128, 128, 8
    $region29: #{tpu_custom_call.1} parent=1 // pred_fallthru
      _
    // Predicated region
    $region30: #{tpu_custom_call.1} parent=1 // pred_check
      _
    $region31: #{tpu_custom_call.1} parent=1 // pred_check_branch
      %116 = sbr.rel (0) target = $region33
    $region32: #{tpu_custom_call.1} parent=1 // pred_region
      %117 = dma.done [#allocation4], 256
    $region33: #{tpu_custom_call.1} parent=1 // pred_fallthru
      _
    // Predicated region
    $region34: #{tpu_custom_call.1} parent=1 // pred_check
      _
    $region35: #{tpu_custom_call.1} parent=1 // pred_check_branch
      %119 = sbr.rel (0) target = $region37
    $region36: #{tpu_custom_call.1} parent=1 // pred_region
      %120 = dma.done [#allocation9], 256
    $region37: #{tpu_custom_call.1} parent=1 // pred_fallthru
      _
    %121 = vsyncpa [#allocation3], 1
    %122 = vsyncpa [#allocation6], 1
    %123 = vsyncpa [#allocation4], 1
    %124 = vsyncpa [#allocation9], 1

</llo_original>
